<compile_context>
chip_gen: v6e
topology: v6e:2x2x1
jax: 0.10.0
libtpu: 0.0.40
codegen_flags: <defaults>
</compile_context>

<pallas_src>
import math

import jax
import jax.numpy as jnp
from jax.experimental import pallas as pl
from jax.experimental.pallas import tpu as pltpu


# ------------------------------- Pallas kernel ------------------------------ #
def _drop_path_kernel(x_ref, scale_ref, o_ref):
    # x: (tb, tf), scale: (tb, 1) -> broadcast multiply along the lane axis.
    o_ref[...] = x_ref[...] * scale_ref[...]


def _pick_tile(n, align, max_tile):
    """Largest tile t <= max_tile that is a multiple of `align` and divides n.

    Falls back to the full extent n (always legal: a block equal to the full
    array dim is accepted even when not (8,128)-aligned)."""
    if n % align == 0:
        t = min(n, max_tile)
        t = max(align, (t // align) * align)
        while t > align and n % t != 0:
            t -= align
        if n % t == 0:
            return t
    return n


def _sample_keep_mask(key, batch, keep_prob, dtype):
    """floor(keep_prob + U[0,1)) per sample -> 1.0 with prob keep_prob else 0.0."""
    u = jax.random.uniform(key, (batch,), dtype=jnp.float32)
    return jnp.floor(jnp.float32(keep_prob) + u).astype(dtype)


def drop_path(x, drop_prob=0.0, *, training=False, key=None):
    """DropPath forward. Identity in eval mode / drop_prob == 0."""
    if drop_prob == 0.0 or not training:
        return x
    if key is None:
        raise ValueError("drop_path needs a PRNG key in training mode")

    keep_prob = 1.0 - drop_prob
    batch = x.shape[0]
    feat = int(math.prod(x.shape[1:]))

    mask = _sample_keep_mask(key, batch, keep_prob, x.dtype)             # (B,)
    scale = (mask / jnp.asarray(keep_prob, x.dtype)).reshape(batch, 1)   # 0 or 1/kp

    x2 = x.reshape(batch, feat)

    itemsize = jnp.dtype(x.dtype).itemsize
    tf = _pick_tile(feat, 128, 4096)
    max_tb = max(8, (2 << 20) // max(1, tf * itemsize))  # cap ~2 MiB per x tile
    tb = _pick_tile(batch, 8, max_tb)

    grid = (pl.cdiv(batch, tb), pl.cdiv(feat, tf))

    out2 = pl.pallas_call(
        _drop_path_kernel,
        out_shape=jax.ShapeDtypeStruct((batch, feat), x.dtype),
        grid=grid,
        in_specs=[
            pl.BlockSpec((tb, tf), lambda i, j: (i, j)),
            pl.BlockSpec((tb, 1), lambda i, j: (i, 0)),
        ],
        out_specs=pl.BlockSpec((tb, tf), lambda i, j: (i, j)),
        compiler_params=pltpu.CompilerParams(
            dimension_semantics=("parallel", "parallel")
        ),
    )(x2, scale)

    return out2.reshape(x.shape)


# ------------------------------ Pure-JAX reference -------------------------- #
def reference_drop_path(x, drop_prob, *, training=False, key=None):
    if drop_prob == 0.0 or not training:
        return x
    keep_prob = 1.0 - drop_prob
    mask = _sample_keep_mask(key, x.shape[0], keep_prob, x.dtype)
    bshape = (x.shape[0],) + (1,) * (x.ndim - 1)
    return x / keep_prob * mask.reshape(bshape)


if __name__ == "__main__":
    B, C, H, W = 2, 4, 16, 16
    drop_prob = 0.3

    root = jax.random.PRNGKey(0)
    kx, km = jax.random.split(root)
    x = jax.random.normal(kx, (B, C, H, W), jnp.float32)

    # Training mode: exercises the Pallas kernel.
    out = drop_path(x, drop_prob, training=True, key=km)
    out = jax.block_until_ready(out)
    ref = reference_drop_path(x, drop_prob, training=True, key=km)
    assert out.shape == x.shape
    assert jnp.allclose(out, ref, atol=1e-6, rtol=1e-6), "mismatch vs reference"

    # Eval mode / drop_prob == 0 -> identity (same as the PyTorch module).
    assert jnp.array_equal(drop_path(x, drop_prob, training=False), x)
    assert jnp.array_equal(drop_path(x, 0.0, training=True, key=km), x)

    print("KERNEL_OK")
</pallas_src>

<mosaic_0001>
module attributes {stable_mosaic.version = 11 : i64} {
  func.func @_drop_path_kernel(%arg0: i32, %arg1: i32, %arg2: memref<2x1024xf32, #tpu.memory_space<vmem>>, %arg3: memref<2x1xf32, #tpu.memory_space<vmem>>, %arg4: memref<2x1024xf32, #tpu.memory_space<vmem>>) attributes {dimension_semantics = [#tpu.dimension_semantics<parallel>, #tpu.dimension_semantics<parallel>], iteration_bounds = array<i64: 1, 1>, scalar_prefetch = 0 : i64, scratch_operands = 0 : i64, tpu.core_type = #tpu.core_type<tc>, window_params = [{transform_indices = @transform_0, window_bounds = array<i64: 2, 1024>}, {transform_indices = @transform_1, window_bounds = array<i64: 2, 1>}, {transform_indices = @transform_2, window_bounds = array<i64: 2, 1024>}]} {
    %c0 = arith.constant 0 : index
    %c0_0 = arith.constant 0 : index
    %0 = vector.load %arg2[%c0, %c0_0] : memref<2x1024xf32, #tpu.memory_space<vmem>>, vector<2x1024xf32>
    %c0_1 = arith.constant 0 : index
    %c0_2 = arith.constant 0 : index
    %1 = vector.load %arg3[%c0_1, %c0_2] : memref<2x1xf32, #tpu.memory_space<vmem>>, vector<2x1xf32>
    %2 = vector.broadcast %1 : vector<2x1xf32> to vector<2x1024xf32>
    %3 = arith.mulf %0, %2 : vector<2x1024xf32>
    %c0_3 = arith.constant 0 : index
    %c0_4 = arith.constant 0 : index
    %4 = vector.load %arg4[%c0_3, %c0_4] : memref<2x1024xf32, #tpu.memory_space<vmem>>, vector<2x1024xf32>
    tpu.vector_store %arg4[%c0_3, %c0_4], %3 {strides = array<i32>} : memref<2x1024xf32, #tpu.memory_space<vmem>>, vector<2x1024xf32>,
    return
  }
  func.func @transform_0(%arg0: i32, %arg1: i32) -> (i32, i32) {
    %c0_i32 = arith.constant 0 : i32
    return %arg0, %arg1 : i32, i32
  }
  func.func @transform_1(%arg0: i32, %arg1: i32) -> (i32, i32) {
    %c0_i32 = arith.constant 0 : i32
    %c0_i32_0 = arith.constant 0 : i32
    return %arg0, %c0_i32 : i32, i32
  }
  func.func @transform_2(%arg0: i32, %arg1: i32) -> (i32, i32) {
    %c0_i32 = arith.constant 0 : i32
    return %arg0, %arg1 : i32, i32
  }
}

</mosaic_0001>

<llo_original>
// kernel: tpu_custom_call.1
$region0: #{tpu_custom_call.1}
  #allocation0 [shape = 'u32[]', space=smem, size = 0x4, offset = 0x4, fixed_abs, tag = 'smem constant byte address 0x4 - core index']
  #allocation1 [shape = 'u32[144,128]{1,0:T(1,128)}', space=vmem, size = 0x12000, scoped, tag = 'internal scratch']
  %s0 = inlined_call_operand.hbm [shape: f32[2,1024], index: 0, kind: input, shape index: {}]
  %s1 = inlined_call_operand.vmem [shape: f32[2,1], index: 1, kind: input, shape index: {}]
  %s2 = inlined_call_operand.hbm [shape: f32[2,1024], index: 2, kind: output, shape index: {}]
  %s3 = sld [smem:[#allocation0]]
  $region22: #{tpu_custom_call.1} parent=0
    _
  %s5 = ssub.s32 1, %s3
  %s6 = scalar_select 0, %s5, %s3
  $region1: #{tpu_custom_call.1} parent=0
    #allocation2 [shape = 'u8[8192]{0}', space=vmem, size = 0x2000, scoped, tag = 'input window, operand 0, single buffered']
    #allocation3 [shape = 's32[1]{0}', space=sflag, size = 0x4, scoped, tag = 'scoped memory for tpu_custom_call.1']
    #allocation4 [shape = 's32[1]{0}', space=sflag, size = 0x4, scoped, tag = 'scoped memory for tpu_custom_call.1']
    #allocation5 [shape = 'u8[8192]{0}', space=vmem, size = 0x2000, scoped, tag = 'output window, operand 0, single buffered']
    %7 = vsyncpa [#allocation3], 0
    %8 = vsyncpa [#allocation4], 0
    // Predicated region
    $region2: #{tpu_custom_call.1} parent=1 // pred_check
      _
    $region3: #{tpu_custom_call.1} parent=1 // pred_check_branch
      %10 = sbr.rel (0) target = $region5
    $region4: #{tpu_custom_call.1} parent=1 // pred_region
      %s12 = ssub.s32 256, 256
      %13 = vsyncadd [#allocation3], %s12
      %s15 = sshll.u32 [#allocation2], 4
      %s16 = int_to_ptr.vmem [resolvable:$true] %s15
      %18 = dma.hbm_to_vmem [thread:$0]  %s0, 256, %s16, [#allocation3]
    $region5: #{tpu_custom_call.1} parent=1 // pred_fallthru
      _
    // Predicated region
    $region6: #{tpu_custom_call.1} parent=1 // pred_check
      _
    $region7: #{tpu_custom_call.1} parent=1 // pred_check_branch
      %20 = sbr.rel (0) target = $region9
    $region8: #{tpu_custom_call.1} parent=1 // pred_region
      _
    $region9: #{tpu_custom_call.1} parent=1 // pred_fallthru
      _
    // Predicated region
    $region10: #{tpu_custom_call.1} parent=1 // pred_check
      _
    $region11: #{tpu_custom_call.1} parent=1 // pred_check_branch
      %22 = sbr.rel (0) target = $region13
    $region12: #{tpu_custom_call.1} parent=1 // pred_region
      %23 = dma.done [#allocation3], 256
    $region13: #{tpu_custom_call.1} parent=1 // pred_fallthru
      _
    %v24 = vld [vmem:[#allocation2] sm:$0xff]
    %v25 = vld [vmem:[#allocation2 + $0x8] sm:$0xff]
    %v26 = vld [vmem:[%s1] sm:$0x3]
    %28 = vset.pattern.permute.xlu0 0
    %29 = vperm.xlu0 %28, %v26
    %v30 = vpop.permute.xlu0 %29
    %v32 = vunpack.c.l.s4 269488144
    %v33 = vunpack.c.0.s8 %v32
    %v34 = vlaneseq
    %v35 = vshrl.u32 %v34, 7
    %v36 = vsub.s32 %v33, %v35
    %v37 = vrot.slane %v30, %v36
    %v39 = vmul.f32 %v24, %v37
    %v40 = vmul.f32 %v25, %v37
    %41 = vst [vmem:[#allocation5] sm:$0xff] %v39
    %42 = vst [vmem:[#allocation5 + $0x8] sm:$0xff] %v40
    // Predicated region
    $region14: #{tpu_custom_call.1} parent=1 // pred_check
      _
    $region15: #{tpu_custom_call.1} parent=1 // pred_check_branch
      %44 = sbr.rel (0) target = $region17
    $region16: #{tpu_custom_call.1} parent=1 // pred_region
      %s46 = ssub.s32 256, 256
      %47 = vsyncadd [#allocation4], %s46
      %s49 = sshll.u32 [#allocation5], 4
      %s50 = int_to_ptr.vmem [resolvable:$true] %s49
      %52 = dma.vmem_to_hbm [thread:$0]  %s50, 256, %s2, [#allocation4]
    $region17: #{tpu_custom_call.1} parent=1 // pred_fallthru
      _
    // Predicated region
    $region18: #{tpu_custom_call.1} parent=1 // pred_check
      _
    $region19: #{tpu_custom_call.1} parent=1 // pred_check_branch
      %54 = sbr.rel (0) target = $region21
    $region20: #{tpu_custom_call.1} parent=1 // pred_region
      %55 = dma.done [#allocation4], 256
    $region21: #{tpu_custom_call.1} parent=1 // pred_fallthru
      _
    %56 = vsyncpa [#allocation3], 1
    %57 = vsyncpa [#allocation4], 1

</llo_original>
